<compile_context>
chip_gen: v5e
topology: v5e:2x2
jax: 0.10.0
libtpu: 0.0.40
codegen_flags: <defaults>
</compile_context>

<pallas_src>
import jax
import jax.numpy as jnp
from jax import lax
from jax.experimental import pallas as pl
from jax.experimental.pallas import tpu as pltpu

_SQRT_2_OVER_PI = 0.7978845608028654


# ---------------------------------------------------------------------------
# Kernel factory
# ---------------------------------------------------------------------------
def _make_mlp_kernel(c, use_int8):
    inv_s_in, zp_in = c["inv_s_in"], c["zp_in"]
    fc_requant, lo_g, hi_g = c["fc_requant"], c["lo_g"], c["hi_g"]
    s_gi = c["s_gi"]
    inv_s_go, zp_go = c["inv_s_go"], c["zp_go"]
    proj_dequant = c["proj_dequant"]

    op_dtype = jnp.int8 if use_int8 else jnp.bfloat16
    acc_type = jnp.int32 if use_int8 else jnp.float32
    dims = (((1,), (0,)), ((), ()))  # plain matmul

    def kernel(x_ref, wfc_ref, bfc_ref, wproj_ref, bproj_ref, out_ref,
               xq_ref, acc_ref):
        k = pl.program_id(1)

        # --- per row-tile init: quantize activations once, zero accumulator --
        @pl.when(k == 0)
        def _():
            xf = x_ref[...].astype(jnp.float32)
            # quantize_tensor: clip(round(x/s) + zp, -128, 127)  (true int8 code)
            xq = jnp.clip(jnp.round(xf * inv_s_in) + zp_in, -128.0, 127.0)
            xq_ref[...] = xq.astype(op_dtype)
            acc_ref[...] = jnp.zeros_like(acc_ref)

        # --- c_fc chunk: int8 x int8 -> int32 (+ bias incl. -zp_in*colsum) ---
        acc_fc = lax.dot_general(xq_ref[...], wfc_ref[...], dims,
                                 preferred_element_type=acc_type)
        accf = (acc_fc + bfc_ref[...]).astype(jnp.float32)

        # requant to GELU-input domain; zp_gi folded into clip bounds
        # (hc == h_q - zp_gi; never used as an int8 operand so range is free)
        hc = jnp.clip(jnp.round(accf * fc_requant), lo_g, hi_g)

        # --- gelu_map: dequant -> gelu_new -> requant (tanh rides the EUP) ---
        h = hc * s_gi
        t = jnp.tanh(_SQRT_2_OVER_PI * h * (1.0 + 0.044715 * (h * h)))
        g = h * (0.5 + 0.5 * t)
        gq = jnp.clip(jnp.round(g * inv_s_go) + zp_go, -128.0, 127.0)

        # --- c_proj chunk: int8 x int8 -> int32, accumulate over I chunks ----
        # (the -zp_go * colsum(W_proj) correction is folded into bproj_eff)
        part = lax.dot_general(gq.astype(op_dtype), wproj_ref[...], dims,
                               preferred_element_type=acc_type)
        acc_ref[...] += part

        # --- finalize: dequant to fp32, add fp32 bias -------------------------
        @pl.when(k == pl.num_programs(1) - 1)
        def _():
            out_ref[...] = (acc_ref[...].astype(jnp.float32) * proj_dequant
                            + bproj_ref[...])

    return kernel


# ---------------------------------------------------------------------------
# Helpers
# ---------------------------------------------------------------------------
def _round_up(x, m):
    return ((x + m - 1) // m) * m


def _pick_ti(I, ti_max):
    """Largest multiple-of-128 divisor of I that is <= ti_max (else I)."""
    cand = (min(ti_max, I) // 128) * 128
    while cand >= 128:
        if I % cand == 0:
            return cand
        cand -= 128
    return I


def _supports_int8_mxu():
    try:
        kind = jax.devices()[0].device_kind.lower()
    except Exception:
        return False
    # v7x MXU has no integer path; unknown / older generations use bf16 fallback.
    return any(tag in kind for tag in ("v5", "v6"))


# ---------------------------------------------------------------------------
# Wrapper (flatten, pad, BlockSpecs, pallas_call)
# ---------------------------------------------------------------------------
def int8_ime_gpt2_mlp(hidden_states, params, quant, *, tm=256, tI=512,
                      use_int8_mxu=None):
    B, S, H = hidden_states.shape
    M = B * S
    I = params["wfc_q"].shape[1]

    if use_int8_mxu is None:
        use_int8_mxu = _supports_int8_mxu()

    s_in = float(quant["c_fc_input_scale"])
    zp_in = float(quant["c_fc_input_zero_point"])
    s_gi = float(quant["c_gelu_input_scale"])
    zp_gi = float(quant["c_gelu_input_zero_point"])
    s_go = float(quant["c_gelu_output_scale"])
    zp_go = float(quant["c_gelu_output_zero_point"])
    fc_requant = s_in * float(params["fc_w_scale"]) / s_gi
    proj_dequant = s_go * float(params["proj_w_scale"])

    consts = dict(
        inv_s_in=1.0 / s_in, zp_in=zp_in,
        fc_requant=fc_requant, lo_g=-128.0 - zp_gi, hi_g=127.0 - zp_gi,
        s_gi=s_gi, inv_s_go=1.0 / s_go, zp_go=zp_go,
        proj_dequant=proj_dequant,
    )
    kernel = _make_mlp_kernel(consts, use_int8_mxu)

    # --- weights: int8 as-is (int path) or host-converted bf16 (v7x path) ----
    wfc_q, wproj_q = params["wfc_q"], params["wproj_q"]
    if use_int8_mxu:
        wfc, wproj = wfc_q, wproj_q
        op_dtype, acc_dtype, bias_dtype = jnp.int8, jnp.int32, jnp.int32
    else:
        wfc, wproj = wfc_q.astype(jnp.bfloat16), wproj_q.astype(jnp.bfloat16)
        op_dtype, acc_dtype, bias_dtype = jnp.bfloat16, jnp.float32, jnp.float32

    # --- zero-point corrections folded into per-column biases ----------------
    #   c_fc  : (q - zp_in) @ W == q @ W - zp_in * colsum(W)       (int32 bias)
    #   c_proj: (q - zp_go) @ W == q @ W - zp_go * colsum(W)       (fp32 bias)
    colsum_fc = jnp.sum(wfc_q.astype(jnp.int32), axis=0)                 # (I,)
    bfc_eff = (params["bfc_int"].astype(jnp.int32)
               - int(round(zp_in)) * colsum_fc).astype(bias_dtype).reshape(1, I)
    colsum_pr = jnp.sum(wproj_q.astype(jnp.int32), axis=0).astype(jnp.float32)
    bproj_eff = (params["bproj"].astype(jnp.float32)
                 - zp_go * colsum_pr * proj_dequant).reshape(1, H)

    # --- row tiling (keep >=2 parallel steps so both v7x TCs get work) -------
    min_tm = 32 if use_int8_mxu else 8       # int8 sublane packing is 32
    tm = max(min_tm, min(tm, _round_up(M, min_tm)))
    if _round_up(M, tm) // tm < 2:
        tm = max(min_tm, min(tm, _round_up(-(-M // 2), min_tm)))
    M_pad = _round_up(M, tm)

    # --- intermediate-dimension tiling (innermost "arbitrary" axis) ----------
    tI = _pick_ti(I, tI)
    n_k = I // tI

    x = hidden_states.reshape(M, H)          # keep native dtype (upcast in-kernel)
    if M_pad != M:
        x = jnp.pad(x, ((0, M_pad - M), (0, 0)))

    # --- VMEM budget: tiles + scratch + streamed weights + body temporaries --
    wb = 1 if use_int8_mxu else 2
    xb = x.dtype.itemsize
    need = (2 * tm * H * xb                          # activation tile (2 bufs)
            + 2 * tm * H * 4                         # output tile (2 bufs)
            + tm * H * (1 if use_int8_mxu else 2)    # quantized-activation scratch
            + tm * H * 4                             # matmul accumulator scratch
            + 2 * (H * tI + tI * H) * wb             # streamed weight chunks (2 bufs)
            + 2 * tI * 4 + H * 4                     # bias blocks
            + 8 * tm * tI * 4)                       # live f32/i32 intermediates
    try:
        vmem_cap = int(pltpu.get_tpu_info().vmem_capacity_bytes)
    except Exception:
        vmem_cap = 64 << 20                          # v7x per-core size (safe floor)
    vmem_limit = int(min(max(need + (8 << 20), 32 << 20), (vmem_cap * 9) // 10))

    out = pl.pallas_call(
        kernel,
        out_shape=jax.ShapeDtypeStruct((M_pad, H), jnp.float32),
        grid_spec=pltpu.PrefetchScalarGridSpec(
            num_scalar_prefetch=0,
            grid=(M_pad // tm, n_k),
            in_specs=[
                pl.BlockSpec((tm, H), lambda i, k: (i, 0)),   # activations
                pl.BlockSpec((H, tI), lambda i, k: (0, k)),   # c_fc weight chunk
                pl.BlockSpec((1, tI), lambda i, k: (0, k)),   # c_fc bias (+zp fold)
                pl.BlockSpec((tI, H), lambda i, k: (k, 0)),   # c_proj weight chunk
                pl.BlockSpec((1, H), lambda i, k: (0, 0),
                             pipeline_mode=pl.Buffered(1)),   # c_proj bias (resident)
            ],
            out_specs=pl.BlockSpec((tm, H), lambda i, k: (i, 0)),
            scratch_shapes=[pltpu.VMEM((tm, H), op_dtype),    # quantized activations
                            pltpu.VMEM((tm, H), acc_dtype)],  # c_proj accumulator
        ),
        compiler_params=pltpu.CompilerParams(
            dimension_semantics=("parallel", "arbitrary"),
            vmem_limit_bytes=vmem_limit),
    )(x, wfc, bfc_eff, wproj, bproj_eff)

    return out[:M].reshape(B, S, H)


# ---------------------------------------------------------------------------
# Deterministic parameter construction (synthetic "from_float")
# ---------------------------------------------------------------------------
def make_params(key, hidden, intermediate, quant):
    k1, k2, k3, k4 = jax.random.split(key, 4)
    w_fc = jax.random.normal(k1, (intermediate, hidden), jnp.float32) * 0.02
    b_fc = jax.random.normal(k2, (intermediate,), jnp.float32) * 0.02
    w_proj = jax.random.normal(k3, (hidden, intermediate), jnp.float32) * 0.02
    b_proj = jax.random.normal(k4, (hidden,), jnp.float32) * 0.02

    # per-tensor symmetric int8 weight quantization
    fc_w_scale = float(jnp.max(jnp.abs(w_fc)) / 127.0)
    proj_w_scale = float(jnp.max(jnp.abs(w_proj)) / 127.0)
    wfc_q = jnp.clip(jnp.round(w_fc / fc_w_scale), -128, 127).astype(jnp.int8)
    wproj_q = jnp.clip(jnp.round(w_proj / proj_w_scale), -128, 127).astype(jnp.int8)

    # c_fc carries an int32 bias in the accumulator scale (W8A8B32O8)
    bfc_int = jnp.round(
        b_fc / (quant["c_fc_input_scale"] * fc_w_scale)).astype(jnp.int32)

    return {
        "wfc_q": wfc_q.T,        # (H, I) int8  (x @ W layout)
        "wproj_q": wproj_q.T,    # (I, H) int8
        "bfc_int": bfc_int,      # (I,)  int32
        "bproj": b_proj,         # (H,)  fp32
        "fc_w_scale": fc_w_scale,
        "proj_w_scale": proj_w_scale,
    }


# ---------------------------------------------------------------------------
# Pure-JAX reference: direct transcription of the module's forward math
# ---------------------------------------------------------------------------
def reference_mlp(hidden_states, params, quant):
    B, S, H = hidden_states.shape
    x = hidden_states.reshape(B * S, H).astype(jnp.float32)
    s_in, zp_in = quant["c_fc_input_scale"], quant["c_fc_input_zero_point"]
    s_gi, zp_gi = quant["c_gelu_input_scale"], quant["c_gelu_input_zero_point"]
    s_go, zp_go = quant["c_gelu_output_scale"], quant["c_gelu_output_zero_point"]
    wfc = params["wfc_q"].astype(jnp.float32)
    wproj = params["wproj_q"].astype(jnp.float32)

    x_q = jnp.clip(jnp.round(x / s_in) + zp_in, -128.0, 127.0)
    acc = jnp.dot(x_q - zp_in, wfc, precision=lax.Precision.HIGHEST) \
        + params["bfc_int"].astype(jnp.float32)
    h_q = jnp.clip(jnp.round(acc * (s_in * params["fc_w_scale"] / s_gi)) + zp_gi,
                   -128.0, 127.0)
    h_f = (h_q - zp_gi) * s_gi
    # TODO(synk): the module uses a 256-entry int8 LUT (gelu_map); this inline
    # gelu_new is bit-identical only if the LUT was built from the same formula.
    g = 0.5 * h_f * (1.0 + jnp.tanh(_SQRT_2_OVER_PI * (h_f + 0.044715 * h_f ** 3)))
    g_q = jnp.clip(jnp.round(g / s_go) + zp_go, -128.0, 127.0)
    acc2 = jnp.dot(g_q - zp_go, wproj, precision=lax.Precision.HIGHEST)
    out = acc2 * (s_go * params["proj_w_scale"]) + params["bproj"]
    return out.reshape(B, S, H)


# ---------------------------------------------------------------------------
if __name__ == "__main__":
    BATCH, SEQ, HIDDEN = 2, 8, 128        # lane-dense hidden (multiple of 128)
    INTERMEDIATE = 4 * HIDDEN             # 512

    # Quantization constants that from_float() would have calibrated
    # (power-of-two scales so x/s and x*inv_s round identically).
    quant = {
        "c_fc_input_scale": 1.0 / 32.0,    "c_fc_input_zero_point": 2.0,
        "c_gelu_input_scale": 1.0 / 128.0, "c_gelu_input_zero_point": -3.0,
        "c_gelu_output_scale": 1.0 / 128.0, "c_gelu_output_zero_point": 5.0,
        # stored by the PyTorch module but unused in forward (c_proj emits fp32)
        "c_proj_output_scale": 0.01,       "c_proj_output_zero_point": 0.0,
    }

    key = jax.random.PRNGKey(0)
    kx, kp = jax.random.split(key)
    params = make_params(kp, HIDDEN, INTERMEDIATE, quant)
    hidden_states = jax.random.normal(kx, (BATCH, SEQ, HIDDEN), jnp.float32)

    # tI=256 so the I-chunked accumulator path (2 reduction steps) is exercised.
    out = jax.block_until_ready(
        int8_ime_gpt2_mlp(hidden_states, params, quant, tI=256))
    ref = jax.block_until_ready(reference_mlp(hidden_states, params, quant))

    assert out.shape == (BATCH, SEQ, HIDDEN) and out.dtype == jnp.float32
    err = float(jnp.max(jnp.abs(out - ref)))
    assert err < 2e-3, f"mismatch vs reference (max abs err {err})"
    print("KERNEL_OK")
</pallas_src>

<mosaic_0001>
module attributes {stable_mosaic.version = 11 : i64} {
  func.func @kernel(%arg0: i32, %arg1: i32, %arg2: memref<8x128xf32, #tpu.memory_space<vmem>>, %arg3: memref<128x256xbf16, #tpu.memory_space<vmem>>, %arg4: memref<1x256xf32, #tpu.memory_space<vmem>>, %arg5: memref<256x128xbf16, #tpu.memory_space<vmem>>, %arg6: memref<1x128xf32, #tpu.memory_space<vmem>>, %arg7: memref<8x128xf32, #tpu.memory_space<vmem>>, %arg8: memref<8x128xbf16, #tpu.memory_space<vmem>>, %arg9: memref<8x128xf32, #tpu.memory_space<vmem>>) attributes {dimension_semantics = [#tpu.dimension_semantics<parallel>, #tpu.dimension_semantics<arbitrary>], iteration_bounds = array<i64: 2, 2>, scalar_prefetch = 0 : i64, scratch_operands = 2 : i64, tpu.core_type = #tpu.core_type<tc>, window_params = [{transform_indices = @transform_0, window_bounds = array<i64: 8, 128>}, {transform_indices = @transform_1, window_bounds = array<i64: 128, 256>}, {transform_indices = @transform_2, window_bounds = array<i64: 1, 256>}, {transform_indices = @transform_3, window_bounds = array<i64: 256, 128>}, {pipeline_mode = #tpu.pipeline_mode<synchronous>, transform_indices = @transform_4, window_bounds = array<i64: 1, 128>}, {transform_indices = @transform_5, window_bounds = array<i64: 8, 128>}]} {
    %c0_i32 = arith.constant 0 : i32
    %0 = arith.cmpi eq, %arg1, %c0_i32 : i32
    %1 = arith.extui %0 : i1 to i32
    %c0_i32_0 = arith.constant 0 : i32
    %2 = arith.cmpi ne, %1, %c0_i32_0 : i32
    scf.if %2 {
      %c0_27 = arith.constant 0 : index
      %c0_28 = arith.constant 0 : index
      %50 = vector.load %arg2[%c0_27, %c0_28] : memref<8x128xf32, #tpu.memory_space<vmem>>, vector<8x128xf32>
      %cst_29 = arith.constant 3.200000e+01 : f32
      %51 = vector.broadcast %cst_29 : f32 to vector<8x128xf32>
      %52 = arith.mulf %50, %51 : vector<8x128xf32>
      %53 = math.roundeven %52 : vector<8x128xf32>
      %cst_30 = arith.constant 2.000000e+00 : f32
      %54 = vector.broadcast %cst_30 : f32 to vector<8x128xf32>
      %55 = arith.addf %53, %54 : vector<8x128xf32>
      %cst_31 = arith.constant -1.280000e+02 : f32
      %cst_32 = arith.constant 1.270000e+02 : f32
      %56 = vector.broadcast %cst_31 : f32 to vector<8x128xf32>
      %57 = arith.maximumf %56, %55 : vector<8x128xf32>
      %58 = vector.broadcast %cst_32 : f32 to vector<8x128xf32>
      %59 = arith.minimumf %58, %57 : vector<8x128xf32>
      %60 = arith.truncf %59 : vector<8x128xf32> to vector<8x128xbf16>
      %c0_33 = arith.constant 0 : index
      %c0_34 = arith.constant 0 : index
      %61 = vector.load %arg8[%c0_33, %c0_34] : memref<8x128xbf16, #tpu.memory_space<vmem>>, vector<8x128xbf16>
      tpu.vector_store %arg8[%c0_33, %c0_34], %60 {strides = array<i32>} : memref<8x128xbf16, #tpu.memory_space<vmem>>, vector<8x128xbf16>,
      %cst_35 = arith.constant 0.000000e+00 : f32
      %62 = vector.broadcast %cst_35 : f32 to vector<8x128xf32>
      %c0_36 = arith.constant 0 : index
      %c0_37 = arith.constant 0 : index
      %63 = vector.load %arg9[%c0_36, %c0_37] : memref<8x128xf32, #tpu.memory_space<vmem>>, vector<8x128xf32>
      tpu.vector_store %arg9[%c0_36, %c0_37], %62 {strides = array<i32>} : memref<8x128xf32, #tpu.memory_space<vmem>>, vector<8x128xf32>,
    } else {
    }
    %c0 = arith.constant 0 : index
    %c0_1 = arith.constant 0 : index
    %3 = vector.load %arg8[%c0, %c0_1] : memref<8x128xbf16, #tpu.memory_space<vmem>>, vector<8x128xbf16>
    %c0_2 = arith.constant 0 : index
    %c0_3 = arith.constant 0 : index
    %4 = vector.load %arg3[%c0_2, %c0_3] : memref<128x256xbf16, #tpu.memory_space<vmem>>, vector<128x256xbf16>
    %cst = arith.constant dense<0.000000e+00> : vector<8x256xf32>
    %5 = tpu.matmul %3, %4, %cst {dimension_numbers = #tpu.dot_dimension_numbers<[1], [0], [0], [1], [0, 0, 1, 1], [], []>} : vector<8x128xbf16>, vector<128x256xbf16>, vector<8x256xf32> -> vector<8x256xf32>
    %c0_4 = arith.constant 0 : index
    %c0_5 = arith.constant 0 : index
    %6 = vector.load %arg4[%c0_4, %c0_5] : memref<1x256xf32, #tpu.memory_space<vmem>>, vector<1x256xf32>
    %7 = vector.broadcast %6 : vector<1x256xf32> to vector<8x256xf32>
    %8 = arith.addf %5, %7 : vector<8x256xf32>
    %cst_6 = arith.constant 0.0028266632 : f32
    %9 = vector.broadcast %cst_6 : f32 to vector<8x256xf32>
    %10 = arith.mulf %8, %9 : vector<8x256xf32>
    %11 = math.roundeven %10 : vector<8x256xf32>
    %cst_7 = arith.constant -1.250000e+02 : f32
    %cst_8 = arith.constant 1.300000e+02 : f32
    %12 = vector.broadcast %cst_7 : f32 to vector<8x256xf32>
    %13 = arith.maximumf %12, %11 : vector<8x256xf32>
    %14 = vector.broadcast %cst_8 : f32 to vector<8x256xf32>
    %15 = arith.minimumf %14, %13 : vector<8x256xf32>
    %cst_9 = arith.constant 7.812500e-03 : f32
    %16 = vector.broadcast %cst_9 : f32 to vector<8x256xf32>
    %17 = arith.mulf %15, %16 : vector<8x256xf32>
    %cst_10 = arith.constant 0.797884583 : f32
    %18 = vector.broadcast %cst_10 : f32 to vector<8x256xf32>
    %19 = arith.mulf %18, %17 : vector<8x256xf32>
    %20 = arith.mulf %17, %17 : vector<8x256xf32>
    %cst_11 = arith.constant 4.471500e-02 : f32
    %21 = vector.broadcast %cst_11 : f32 to vector<8x256xf32>
    %22 = arith.mulf %21, %20 : vector<8x256xf32>
    %cst_12 = arith.constant 1.000000e+00 : f32
    %23 = vector.broadcast %cst_12 : f32 to vector<8x256xf32>
    %24 = arith.addf %23, %22 : vector<8x256xf32>
    %25 = arith.mulf %19, %24 : vector<8x256xf32>
    %26 = math.tanh %25 : vector<8x256xf32>
    %cst_13 = arith.constant 5.000000e-01 : f32
    %27 = vector.broadcast %cst_13 : f32 to vector<8x256xf32>
    %28 = arith.mulf %27, %26 : vector<8x256xf32>
    %cst_14 = arith.constant 5.000000e-01 : f32
    %29 = vector.broadcast %cst_14 : f32 to vector<8x256xf32>
    %30 = arith.addf %29, %28 : vector<8x256xf32>
    %31 = arith.mulf %17, %30 : vector<8x256xf32>
    %cst_15 = arith.constant 1.280000e+02 : f32
    %32 = vector.broadcast %cst_15 : f32 to vector<8x256xf32>
    %33 = arith.mulf %31, %32 : vector<8x256xf32>
    %34 = math.roundeven %33 : vector<8x256xf32>
    %cst_16 = arith.constant 5.000000e+00 : f32
    %35 = vector.broadcast %cst_16 : f32 to vector<8x256xf32>
    %36 = arith.addf %34, %35 : vector<8x256xf32>
    %cst_17 = arith.constant -1.280000e+02 : f32
    %cst_18 = arith.constant 1.270000e+02 : f32
    %37 = vector.broadcast %cst_17 : f32 to vector<8x256xf32>
    %38 = arith.maximumf %37, %36 : vector<8x256xf32>
    %39 = vector.broadcast %cst_18 : f32 to vector<8x256xf32>
    %40 = arith.minimumf %39, %38 : vector<8x256xf32>
    %41 = arith.truncf %40 : vector<8x256xf32> to vector<8x256xbf16>
    %c0_19 = arith.constant 0 : index
    %c0_20 = arith.constant 0 : index
    %42 = vector.load %arg5[%c0_19, %c0_20] : memref<256x128xbf16, #tpu.memory_space<vmem>>, vector<256x128xbf16>
    %cst_21 = arith.constant dense<0.000000e+00> : vector<8x128xf32>
    %43 = tpu.matmul %41, %42, %cst_21 {dimension_numbers = #tpu.dot_dimension_numbers<[1], [0], [0], [1], [0, 0, 1, 1], [], []>} : vector<8x256xbf16>, vector<256x128xbf16>, vector<8x128xf32> -> vector<8x128xf32>
    %c0_22 = arith.constant 0 : index
    %c0_23 = arith.constant 0 : index
    %44 = vector.load %arg9[%c0_22, %c0_23] : memref<8x128xf32, #tpu.memory_space<vmem>>, vector<8x128xf32>
    %45 = arith.addf %44, %43 : vector<8x128xf32>
    %c0_24 = arith.constant 0 : index
    %c0_25 = arith.constant 0 : index
    %46 = vector.load %arg9[%c0_24, %c0_25] : memref<8x128xf32, #tpu.memory_space<vmem>>, vector<8x128xf32>
    tpu.vector_store %arg9[%c0_24, %c0_25], %45 {strides = array<i32>} : memref<8x128xf32, #tpu.memory_space<vmem>>, vector<8x128xf32>,
    %c1_i32 = arith.constant 1 : i32
    %47 = arith.cmpi eq, %arg1, %c1_i32 : i32
    %48 = arith.extui %47 : i1 to i32
    %c0_i32_26 = arith.constant 0 : i32
    %49 = arith.cmpi ne, %48, %c0_i32_26 : i32
    scf.if %49 {
      %c0_27 = arith.constant 0 : index
      %c0_28 = arith.constant 0 : index
      %50 = vector.load %arg9[%c0_27, %c0_28] : memref<8x128xf32, #tpu.memory_space<vmem>>, vector<8x128xf32>
      %cst_29 = arith.constant 5.40845076E-6 : f32
      %51 = vector.broadcast %cst_29 : f32 to vector<8x128xf32>
      %52 = arith.mulf %50, %51 : vector<8x128xf32>
      %c0_30 = arith.constant 0 : index
      %c0_31 = arith.constant 0 : index
      %53 = vector.load %arg6[%c0_30, %c0_31] : memref<1x128xf32, #tpu.memory_space<vmem>>, vector<1x128xf32>
      %54 = vector.broadcast %53 : vector<1x128xf32> to vector<8x128xf32>
      %55 = arith.addf %52, %54 : vector<8x128xf32>
      %c0_32 = arith.constant 0 : index
      %c0_33 = arith.constant 0 : index
      %56 = vector.load %arg7[%c0_32, %c0_33] : memref<8x128xf32, #tpu.memory_space<vmem>>, vector<8x128xf32>
      tpu.vector_store %arg7[%c0_32, %c0_33], %55 {strides = array<i32>} : memref<8x128xf32, #tpu.memory_space<vmem>>, vector<8x128xf32>,
    } else {
    }
    return
  }
  func.func @transform_0(%arg0: i32, %arg1: i32) -> (i32, i32) {
    %c0_i32 = arith.constant 0 : i32
    %c0_i32_0 = arith.constant 0 : i32
    return %arg0, %c0_i32 : i32, i32
  }
  func.func @transform_1(%arg0: i32, %arg1: i32) -> (i32, i32) {
    %c0_i32 = arith.constant 0 : i32
    %c0_i32_0 = arith.constant 0 : i32
    return %c0_i32, %arg1 : i32, i32
  }
  func.func @transform_2(%arg0: i32, %arg1: i32) -> (i32, i32) {
    %c0_i32 = arith.constant 0 : i32
    %c0_i32_0 = arith.constant 0 : i32
    return %c0_i32, %arg1 : i32, i32
  }
  func.func @transform_3(%arg0: i32, %arg1: i32) -> (i32, i32) {
    %c0_i32 = arith.constant 0 : i32
    %c0_i32_0 = arith.constant 0 : i32
    return %arg1, %c0_i32 : i32, i32
  }
  func.func @transform_4(%arg0: i32, %arg1: i32) -> (i32, i32) {
    %c0_i32 = arith.constant 0 : i32
    %c0_i32_0 = arith.constant 0 : i32
    %c0_i32_1 = arith.constant 0 : i32
    return %c0_i32, %c0_i32_0 : i32, i32
  }
  func.func @transform_5(%arg0: i32, %arg1: i32) -> (i32, i32) {
    %c0_i32 = arith.constant 0 : i32
    %c0_i32_0 = arith.constant 0 : i32
    return %arg0, %c0_i32 : i32, i32
  }
}

</mosaic_0001>

<llo_original>
// kernel: tpu_custom_call.1
$region0: #{tpu_custom_call.1}
  #allocation0 [shape = 'u32[]', space=smem, size = 0x4, offset = 0x4, fixed_abs, tag = 'smem constant byte address 0x4 - core index']
  #allocation1 [shape = 'u32[72,128]{1,0:T(1,128)}', space=vmem, size = 0x9000, scoped, tag = 'internal scratch']
  #allocation2 [shape = 'bf16[8,128]{1,0:T(8,128)(2,1)}', space=vmem, size = 0x800, scoped, tag = 'scratch operand']
  #allocation3 [shape = 'f32[8,128]{1,0:T(8,128)}', space=vmem, size = 0x1000, scoped, tag = 'scratch operand']
  %s0 = inlined_call_operand.hbm [shape: f32[16,128], index: 0, kind: input, shape index: {}]
  %s1 = inlined_call_operand.hbm [shape: bf16[128,512], index: 1, kind: input, shape index: {}]
  %s2 = inlined_call_operand.hbm [shape: f32[1,512], index: 2, kind: input, shape index: {}]
  %s3 = inlined_call_operand.hbm [shape: bf16[512,128], index: 3, kind: input, shape index: {}]
  %s4 = inlined_call_operand.vmem [shape: f32[1,128], index: 4, kind: input, shape index: {}]
  %s5 = inlined_call_operand.hbm [shape: f32[16,128], index: 5, kind: output, shape index: {}]
  %s6 = sld [smem:[#allocation0]]
  $region77: #{tpu_custom_call.1} parent=0
    _
  %s8 = ssub.s32 1, %s6
  %s9 = scalar_select 0, %s8, %s6
  $region1: #{tpu_custom_call.1} parent=0
    #allocation4 [shape = 'u8[8192]{0}', space=vmem, size = 0x2000, scoped, tag = 'input window, operand 0']
    #allocation5 [shape = 's32[2]{0}', space=sflag, size = 0x8, scoped, tag = 'scoped memory for tpu_custom_call.1']
    #allocation6 [shape = 's32[2]{0}', space=sflag, size = 0x8, scoped, tag = 'scoped memory for tpu_custom_call.1']
    #allocation7 [shape = 'u8[131072]{0}', space=vmem, size = 0x20000, scoped, tag = 'input window, operand 1']
    #allocation8 [shape = 's32[2]{0}', space=sflag, size = 0x8, scoped, tag = 'scoped memory for tpu_custom_call.1']
    #allocation9 [shape = 'u8[2048]{0}', space=vmem, size = 0x800, scoped, tag = 'input window, operand 2']
    #allocation10 [shape = 'u8[131072]{0}', space=vmem, size = 0x20000, scoped, tag = 'input window, operand 3']
    #allocation11 [shape = 's32[2]{0}', space=sflag, size = 0x8, scoped, tag = 'scoped memory for tpu_custom_call.1']
    #allocation12 [shape = 'u8[8192]{0}', space=vmem, size = 0x2000, scoped, tag = 'output window, operand 0']
    %10 = vsyncpa [#allocation5], 0
    %s11 = scalar_lea.sflag [#allocation5], 1
    %12 = vsyncpa %s11, 0
    %13 = vsyncpa [#allocation8], 0
    %s14 = scalar_lea.sflag [#allocation8], 1
    %15 = vsyncpa %s14, 0
    %16 = vsyncpa [#allocation11], 0
    %s17 = scalar_lea.sflag [#allocation11], 1
    %18 = vsyncpa %s17, 0
    %19 = vsyncpa [#allocation6], 0
    %s20 = scalar_lea.sflag [#allocation6], 1
    %21 = vsyncpa %s20, 0
    loop: start=0, step=1, limit=6
    $region2: #{tpu_custom_call.1} parent=1 // loop_pre_header
      _
    $region3: #{tpu_custom_call.1} parent=1 // loop_header
      %s23 = sphi 0, %s27
      %p24 = scmp.ge.s32.totalorder %s23, 6
      %s30 = sphi 0, %s42
      %s31 = sphi 0, %s38
      %s32 = sphi 0, %s30
      %s33 = sphi 0, %s31
      %s34 = sphi 0, %s32
      %s35 = sphi 0, %s33
      %s45 = sphi 0, %s47
      %s48 = sphi 0, %s45
      %s49 = sphi 0, %s48
      %s65 = sphi 0, %s49
      %s71 = sphi 0, %s73
      %s74 = sphi 0, %s71
      %s75 = sphi 0, %s74
      %s91 = sphi 0, %s75
      %s97 = sphi 0, %s99
      %s100 = sphi 0, %s97
      %s101 = sphi 0, %s100
      %s117 = sphi 0, %s101
      %s123 = sphi 0, %s125
      %s126 = sphi 0, %s123
      %s127 = sphi 0, %s126
      %s143 = sphi 0, %s127
      %s147 = sphi 0, %s147
      %s149 = sphi 0, %s147
      %s150 = sphi 0, %s149
      %s164 = sphi 0, %s150
      %s170 = sphi 0, %s172
      %s173 = sphi 0, %s170
      %s174 = sphi 0, %s173
      %s190 = sphi 0, %s174
    $region4: #{tpu_custom_call.1} parent=1 // loop_header_branch
      %26 = sbr.rel (%p24) target = $region8
    $region5: #{tpu_custom_call.1} parent=1 // loop_body
      %s28 = ssub.s32 %s23, 1
      %s29 = ssub.s32 %s23, 2
      %s36 = sadd.s32 1, %s31
      %p37 = scmp.ge.s32.totalorder %s36, 2
      %s38 = scalar_select %p37, 0, %s36
      %s39 = sadd.s32 1, %s30
      %s40 = scalar_select %p37, %s39, %s30
      %p41 = scmp.ge.s32.totalorder %s40, 2
      %s42 = scalar_select %p41, 0, %s40
      %s43 = ssub.s32 %s30, %s42
      %p44 = scmp.eq.s32.totalorder %s43, 0
      %s46 = sadd.s32 %s45, 1
      %s47 = scalar_select %p44, %s45, %s46
      %p50 = pneg %p44
      %p51 = scmp.eq.s32.totalorder %s23, 3
      %p52 = por %p50, %p51
      %p53 = scmp.ne.s32.totalorder %s45, %s48
      %p54 = scmp.eq.s32.totalorder %s23, 0
      %p55 = por %p53, %p54
      %p56 = scmp.ne.s32.totalorder %s45, %s48
      %p57 = scmp.eq.s32.totalorder %s28, 3
      %p58 = por %p56, %p57
      %p59 = scmp.ne.s32.totalorder %s48, %s49
      %p60 = scmp.eq.s32.totalorder %s28, 0
      %p61 = por %p59, %p60
      %p62 = scmp.ne.s32.totalorder %s48, %s49
      %p63 = scmp.eq.s32.totalorder %s29, 3
      %p64 = por %p62, %p63
      %p66 = scmp.ne.s32.totalorder %s49, %s65
      %p67 = scmp.eq.s32.totalorder %s29, 0
      %p68 = por %p66, %p67
      %s69 = ssub.s32 %s31, %s38
      %p70 = scmp.eq.s32.totalorder %s69, 0
      %s72 = sadd.s32 %s71, 1
      %s73 = scalar_select %p70, %s71, %s72
      %p76 = pneg %p70
      %p77 = scmp.eq.s32.totalorder %s23, 3
      %p78 = por %p76, %p77
      %p79 = scmp.ne.s32.totalorder %s71, %s74
      %p80 = scmp.eq.s32.totalorder %s23, 0
      %p81 = por %p79, %p80
      %p82 = scmp.ne.s32.totalorder %s71, %s74
      %p83 = scmp.eq.s32.totalorder %s28, 3
      %p84 = por %p82, %p83
      %p85 = scmp.ne.s32.totalorder %s74, %s75
      %p86 = scmp.eq.s32.totalorder %s28, 0
      %p87 = por %p85, %p86
      %p88 = scmp.ne.s32.totalorder %s74, %s75
      %p89 = scmp.eq.s32.totalorder %s29, 3
      %p90 = por %p88, %p89
      %p92 = scmp.ne.s32.totalorder %s75, %s91
      %p93 = scmp.eq.s32.totalorder %s29, 0
      %p94 = por %p92, %p93
      %s95 = ssub.s32 %s31, %s38
      %p96 = scmp.eq.s32.totalorder %s95, 0
      %s98 = sadd.s32 %s97, 1
      %s99 = scalar_select %p96, %s97, %s98
      %p102 = pneg %p96
      %p103 = scmp.eq.s32.totalorder %s23, 3
      %p104 = por %p102, %p103
      %p105 = scmp.ne.s32.totalorder %s97, %s100
      %p106 = scmp.eq.s32.totalorder %s23, 0
      %p107 = por %p105, %p106
      %p108 = scmp.ne.s32.totalorder %s97, %s100
      %p109 = scmp.eq.s32.totalorder %s28, 3
      %p110 = por %p108, %p109
      %p111 = scmp.ne.s32.totalorder %s100, %s101
      %p112 = scmp.eq.s32.totalorder %s28, 0
      %p113 = por %p111, %p112
      %p114 = scmp.ne.s32.totalorder %s100, %s101
      %p115 = scmp.eq.s32.totalorder %s29, 3
      %p116 = por %p114, %p115
      %p118 = scmp.ne.s32.totalorder %s101, %s117
      %p119 = scmp.eq.s32.totalorder %s29, 0
      %p120 = por %p118, %p119
      %s121 = ssub.s32 %s31, %s38
      %p122 = scmp.eq.s32.totalorder %s121, 0
      %s124 = sadd.s32 %s123, 1
      %s125 = scalar_select %p122, %s123, %s124
      %p128 = pneg %p122
      %p129 = scmp.eq.s32.totalorder %s23, 3
      %p130 = por %p128, %p129
      %p131 = scmp.ne.s32.totalorder %s123, %s126
      %p132 = scmp.eq.s32.totalorder %s23, 0
      %p133 = por %p131, %p132
      %p134 = scmp.ne.s32.totalorder %s123, %s126
      %p135 = scmp.eq.s32.totalorder %s28, 3
      %p136 = por %p134, %p135
      %p137 = scmp.ne.s32.totalorder %s126, %s127
      %p138 = scmp.eq.s32.totalorder %s28, 0
      %p139 = por %p137, %p138
      %p140 = scmp.ne.s32.totalorder %s126, %s127
      %p141 = scmp.eq.s32.totalorder %s29, 3
      %p142 = por %p140, %p141
      %p144 = scmp.ne.s32.totalorder %s127, %s143
      %p145 = scmp.eq.s32.totalorder %s29, 0
      %p146 = por %p144, %p145
      %s148 = sadd.s32 %s147, 1
      %p151 = scmp.eq.s32.totalorder %s23, 3
      %p152 = scmp.ne.s32.totalorder %s147, %s149
      %p153 = scmp.eq.s32.totalorder %s23, 0
      %p154 = por %p152, %p153
      %p155 = scmp.ne.s32.totalorder %s147, %s149
      %p156 = scmp.eq.s32.totalorder %s28, 3
      %p157 = por %p155, %p156
      %p158 = scmp.ne.s32.totalorder %s149, %s150
      %p159 = scmp.eq.s32.totalorder %s28, 0
      %p160 = por %p158, %p159
      %p161 = scmp.ne.s32.totalorder %s149, %s150
      %p162 = scmp.eq.s32.totalorder %s29, 3
      %p163 = por %p161, %p162
      %p165 = scmp.ne.s32.totalorder %s150, %s164
      %p166 = scmp.eq.s32.totalorder %s29, 0
      %p167 = por %p165, %p166
      %s168 = ssub.s32 %s30, %s42
      %p169 = scmp.eq.s32.totalorder %s168, 0
      %s171 = sadd.s32 %s170, 1
      %s172 = scalar_select %p169, %s170, %s171
      %p175 = pneg %p169
      %p176 = scmp.eq.s32.totalorder %s23, 3
      %p177 = por %p175, %p176
      %p178 = scmp.ne.s32.totalorder %s170, %s173
      %p179 = scmp.eq.s32.totalorder %s23, 0
      %p180 = por %p178, %p179
      %p181 = scmp.ne.s32.totalorder %s170, %s173
      %p182 = scmp.eq.s32.totalorder %s28, 3
      %p183 = por %p181, %p182
      %p184 = scmp.ne.s32.totalorder %s173, %s174
      %p185 = scmp.eq.s32.totalorder %s28, 0
      %p186 = por %p184, %p185
      %p187 = scmp.ne.s32.totalorder %s173, %s174
      %p188 = scmp.eq.s32.totalorder %s29, 3
      %p189 = por %p187, %p188
      %p191 = scmp.ne.s32.totalorder %s174, %s190
      %p192 = scmp.eq.s32.totalorder %s29, 0
      %p193 = por %p191, %p192
      %p194 = scmp.le.s32.totalorder 1, %s23
      %p195 = scmp.lt.s32.totalorder %s23, 5
      %p196 = pnand %p194, %p195
      %p197 = pneg %p196
      // Predicated region
      $region9: #{tpu_custom_call.1} parent=5 // pred_check
        _
      $region10: #{tpu_custom_call.1} parent=5 // pred_check_branch
        %199 = sbr.rel (%p196) target = $region12
      $region11: #{tpu_custom_call.1} parent=5 // pred_region
        %s200 = ssub.s32 %s23, 1
        // Predicated region
        $region13: #{tpu_custom_call.1} parent=11 // pred_check
          %p201 = pneg %p160
        $region14: #{tpu_custom_call.1} parent=11 // pred_check_branch
          %203 = sbr.rel (%p201) target = $region16
        $region15: #{tpu_custom_call.1} parent=11 // pred_region
          _
        $region16: #{tpu_custom_call.1} parent=11 // pred_fallthru
          _
      $region12: #{tpu_custom_call.1} parent=5 // pred_fallthru
        _
      %p204 = scmp.lt.s32.totalorder %s23, 4
      // Predicated region
      $region17: #{tpu_custom_call.1} parent=5 // pred_check
        %p205 = pneg %p204
      $region18: #{tpu_custom_call.1} parent=5 // pred_check_branch
        %207 = sbr.rel (%p205) target = $region20
      $region19: #{tpu_custom_call.1} parent=5 // pred_region
        // Predicated region
        $region21: #{tpu_custom_call.1} parent=19 // pred_check
          %p208 = pneg %p55
        $region22: #{tpu_custom_call.1} parent=19 // pred_check_branch
          %210 = sbr.rel (%p208) target = $region24
        $region23: #{tpu_custom_call.1} parent=19 // pred_region
          %s211 = sand.u32 %s45, 1
          %s212 = scalar_lea.sflag [#allocation5], %s211
          %s213 = sand.u32 %s45, 1
          %s214 = smul.addr %s213, 8
          %s215 = scalar_lea.vmem [#allocation4], %s214
          %217 = vsyncadd %s212, 0
          %s218 = smul.addr %s30, 8
          %s219 = scalar_lea.hbm %s0, %s218
          %s221 = sshll.u32 %s219, 4
          %s222 = int_to_ptr.hbm [resolvable:$true] %s221
          %s223 = sshll.u32 %s215, 4
          %s224 = int_to_ptr.vmem [resolvable:$true] %s223
          %226 = dma.hbm_to_vmem [thread:$0]  %s222, 128, %s224, %s212
        $region24: #{tpu_custom_call.1} parent=19 // pred_fallthru
          _
        // Predicated region
        $region25: #{tpu_custom_call.1} parent=19 // pred_check
          %p227 = pneg %p81
        $region26: #{tpu_custom_call.1} parent=19 // pred_check_branch
          %229 = sbr.rel (%p227) target = $region28
        $region27: #{tpu_custom_call.1} parent=19 // pred_region
          %s230 = sand.u32 %s23, 1
          %s231 = scalar_lea.sflag [#allocation8], %s230
          %s232 = sand.u32 %s71, 1
          %s233 = smul.addr %s232, 128
          %s234 = scalar_lea.vmem [#allocation7], %s233
          %s235 = smul.u32 2, %s31
          %237 = vsyncadd %s231, 0
          %s238 = smul.addr %s235, 4
          %s239 = scalar_lea.hbm %s1, %s238
          %s240 = sshll.u32 %s239, 4
          %s241 = int_to_ptr.hbm [resolvable:$true] %s240
          %s242 = sshll.u32 %s234, 4
          %s243 = int_to_ptr.vmem [resolvable:$true] %s242
          %248 = dma.hbm_to_vmem [thread:$0]  %s241, 2048, %s243, %s231, 256, 128, 8
        $region28: #{tpu_custom_call.1} parent=19 // pred_fallthru
          _
        // Predicated region
        $region29: #{tpu_custom_call.1} parent=19 // pred_check
          %p249 = pneg %p107
        $region30: #{tpu_custom_call.1} parent=19 // pred_check_branch
          %251 = sbr.rel (%p249) target = $region32
        $region31: #{tpu_custom_call.1} parent=19 // pred_region
          %s252 = sand.u32 %s23, 1
          %s253 = scalar_lea.sflag [#allocation8], %s252
          %s254 = sand.u32 %s97, 1
          %s255 = smul.addr %s254, 2
          %s256 = scalar_lea.vmem [#allocation9], %s255
          %s257 = smul.u32 2, %s31
          %259 = vsyncadd %s253, 0
          %s260 = scalar_lea.hbm %s2, %s257
          %s262 = sshll.u32 %s260, 4
          %s263 = int_to_ptr.hbm [resolvable:$true] %s262
          %s264 = sshll.u32 %s256, 4
          %s265 = int_to_ptr.vmem [resolvable:$true] %s264
          %267 = dma.hbm_to_vmem [thread:$0]  %s263, 32, %s265, %s253
        $region32: #{tpu_custom_call.1} parent=19 // pred_fallthru
          _
        // Predicated region
        $region33: #{tpu_custom_call.1} parent=19 // pred_check
          %p268 = pneg %p133
        $region34: #{tpu_custom_call.1} parent=19 // pred_check_branch
          %270 = sbr.rel (%p268) target = $region36
        $region35: #{tpu_custom_call.1} parent=19 // pred_region
          %s271 = sand.u32 %s123, 1
          %s272 = scalar_lea.sflag [#allocation11], %s271
          %s273 = sand.u32 %s123, 1
          %s274 = smul.addr %s273, 128
          %s275 = scalar_lea.vmem [#allocation10], %s274
          %s276 = smul.u32 32, %s31
          %278 = vsyncadd %s272, 0
          %s279 = smul.addr %s276, 4
          %s280 = scalar_lea.hbm %s3, %s279
          %s281 = sshll.u32 %s280, 4
          %s282 = int_to_ptr.hbm [resolvable:$true] %s281
          %s283 = sshll.u32 %s275, 4
          %s284 = int_to_ptr.vmem [resolvable:$true] %s283
          %289 = dma.hbm_to_vmem [thread:$0]  %s282, 2048, %s284, %s272, 64, 64, 4
        $region36: #{tpu_custom_call.1} parent=19 // pred_fallthru
          _
      $region20: #{tpu_custom_call.1} parent=5 // pred_fallthru
        _
      %p290 = scmp.le.s32.totalorder 1, %s23
      %p291 = scmp.lt.s32.totalorder %s23, 5
      %p292 = pnand %p290, %p291
      %p293 = pneg %p292
      // Predicated region
      $region37: #{tpu_custom_call.1} parent=5 // pred_check
        _
      $region38: #{tpu_custom_call.1} parent=5 // pred_check_branch
        %295 = sbr.rel (%p292) target = $region40
      $region39: #{tpu_custom_call.1} parent=5 // pred_region
        %s296 = ssub.s32 %s23, 1
        %s297 = sand.u32 %s48, 1
        %s298 = scalar_lea.sflag [#allocation5], %s297
        %s299 = sand.u32 %s48, 1
        %s300 = smul.addr %s299, 8
        %s301 = scalar_lea.vmem [#allocation4], %s300
        // Predicated region
        $region41: #{tpu_custom_call.1} parent=39 // pred_check
          %p302 = pneg %p61
        $region42: #{tpu_custom_call.1} parent=39 // pred_check_branch
          %304 = sbr.rel (%p302) target = $region44
        $region43: #{tpu_custom_call.1} parent=39 // pred_region
          %306 = dma.done %s298, 128
        $region44: #{tpu_custom_call.1} parent=39 // pred_fallthru
          _
        %s307 = sand.u32 %s28, 1
        %s308 = scalar_lea.sflag [#allocation8], %s307
        %s309 = sand.u32 %s74, 1
        %s310 = smul.addr %s309, 128
        %s311 = scalar_lea.vmem [#allocation7], %s310
        // Predicated region
        $region45: #{tpu_custom_call.1} parent=39 // pred_check
          %p312 = pneg %p87
        $region46: #{tpu_custom_call.1} parent=39 // pred_check_branch
          %314 = sbr.rel (%p312) target = $region48
        $region47: #{tpu_custom_call.1} parent=39 // pred_region
          %316 = dma.done %s308, 2048
        $region48: #{tpu_custom_call.1} parent=39 // pred_fallthru
          _
        %s317 = sand.u32 %s28, 1
        %s318 = scalar_lea.sflag [#allocation8], %s317
        %s319 = sand.u32 %s100, 1
        %s320 = smul.addr %s319, 2
        %s321 = scalar_lea.vmem [#allocation9], %s320
        // Predicated region
        $region49: #{tpu_custom_call.1} parent=39 // pred_check
          %p322 = pneg %p113
        $region50: #{tpu_custom_call.1} parent=39 // pred_check_branch
          %324 = sbr.rel (%p322) target = $region52
        $region51: #{tpu_custom_call.1} parent=39 // pred_region
          %326 = dma.done %s318, 32
        $region52: #{tpu_custom_call.1} parent=39 // pred_fallthru
          _
        %s327 = sand.u32 %s126, 1
        %s328 = scalar_lea.sflag [#allocation11], %s327
        %s329 = sand.u32 %s126, 1
        %s330 = smul.addr %s329, 128
        %s331 = scalar_lea.vmem [#allocation10], %s330
        // Predicated region
        $region53: #{tpu_custom_call.1} parent=39 // pred_check
          %p332 = pneg %p139
        $region54: #{tpu_custom_call.1} parent=39 // pred_check_branch
          %334 = sbr.rel (%p332) target = $region56
        $region55: #{tpu_custom_call.1} parent=39 // pred_region
          %336 = dma.done %s328, 2048
        $region56: #{tpu_custom_call.1} parent=39 // pred_fallthru
          _
        %s337 = sand.u32 %s48, 1
        %s338 = scalar_lea.sflag [#allocation5], %s337
        %s339 = sand.u32 %s48, 1
        %s340 = smul.addr %s339, 8
        %s341 = scalar_lea.vmem [#allocation4], %s340
        %p342 = pneg %p61
        %p343 = pneg %p58
        %s344 = sand.u32 %s28, 1
        %s345 = scalar_lea.sflag [#allocation8], %s344
        %s346 = sand.u32 %s74, 1
        %s347 = smul.addr %s346, 128
        %s348 = scalar_lea.vmem [#allocation7], %s347
        %p349 = pneg %p87
        %p350 = pneg %p84
        %s351 = sand.u32 %s28, 1
        %s352 = scalar_lea.sflag [#allocation8], %s351
        %s353 = sand.u32 %s100, 1
        %s354 = smul.addr %s353, 2
        %s355 = scalar_lea.vmem [#allocation9], %s354
        %p356 = pneg %p113
        %p357 = pneg %p110
        %s358 = sand.u32 %s126, 1
        %s359 = scalar_lea.sflag [#allocation11], %s358
        %s360 = sand.u32 %s126, 1
        %s361 = smul.addr %s360, 128
        %s362 = scalar_lea.vmem [#allocation10], %s361
        %p363 = pneg %p139
        %p364 = pneg %p136
        %p365 = pneg %p160
        %p366 = pneg %p157
        %p367 = pneg %p186
        %p368 = pneg %p183
        %s369 = sand.u32 %s173, 1
        %s370 = scalar_lea.sflag [#allocation6], %s369
        %s371 = sand.u32 %s173, 1
        %s372 = smul.addr %s371, 8
        %s373 = scalar_lea.vmem [#allocation12], %s372
        %s374 = smul.u32 2, %s33
        %s375 = smul.u32 2, %s33
        %s376 = smul.u32 32, %s33
        %p377 = scmp.eq.s32.totalorder %s33, 0
        // Predicated region
        $region57: #{tpu_custom_call.1} parent=39 // pred_check
          %p378 = pneg %p377
        $region58: #{tpu_custom_call.1} parent=39 // pred_check_branch
          %380 = sbr.rel (%p378) target = $region60
        $region59: #{tpu_custom_call.1} parent=39 // pred_region
          %v381 = vld [vmem:[%s301] sm:$0xff]
          %v382 = vmul.f32 %v381, 32.0
          %v383 = vround.ne.pseudo %v382
          %v384 = vadd.f32 %v383, 2.0
          %v385 = vmax.f32 %v384, -128.0
          %v386 = vmin.f32 %v385, 127.0
          %v387 = vpack.c.bf16 %v386, %v386
          %388 = vst [vmem:[#allocation2] sm:$0xf] %v387
          %389 = vst [vmem:[#allocation3] sm:$0xff] 0.0
        $region60: #{tpu_custom_call.1} parent=39 // pred_fallthru
          _
        %v390 = vld [vmem:[#allocation2] sm:$0xf]
        %v391 = vld [vmem:[%s311] sm:$0xff]
        %v392 = vld [vmem:[%s311 + $0x8] sm:$0xff]
        %v393 = vld [vmem:[%s311 + $0x10] sm:$0xff]
        %v394 = vld [vmem:[%s311 + $0x18] sm:$0xff]
        %v395 = vld [vmem:[%s311 + $0x20] sm:$0xff]
        %v396 = vld [vmem:[%s311 + $0x28] sm:$0xff]
        %v397 = vld [vmem:[%s311 + $0x30] sm:$0xff]
        %v398 = vld [vmem:[%s311 + $0x38] sm:$0xff]
        %v399 = vld [vmem:[%s311 + $0x40] sm:$0xff]
        %v400 = vld [vmem:[%s311 + $0x48] sm:$0xff]
        %v401 = vld [vmem:[%s311 + $0x50] sm:$0xff]
        %v402 = vld [vmem:[%s311 + $0x58] sm:$0xff]
        %v403 = vld [vmem:[%s311 + $0x60] sm:$0xff]
        %v404 = vld [vmem:[%s311 + $0x68] sm:$0xff]
        %v405 = vld [vmem:[%s311 + $0x70] sm:$0xff]
        %v406 = vld [vmem:[%s311 + $0x78] sm:$0xff]
        %v407 = vld [vmem:[%s321] sm:$0x3]
        %v409 = vperm.slane %v407, 0
        %v410 = vperm.slane %v407, 1
        %v429 = vunpack.c.l.b16 %v391
        %v430 = vunpack.c.h.b16 %v391
        %v431 = vunpack.c.l.b16 %v392
        %v432 = vunpack.c.h.b16 %v392
        %v433 = vunpack.c.l.b16 %v393
        %v434 = vunpack.c.h.b16 %v393
        %v435 = vunpack.c.l.b16 %v394
        %v436 = vunpack.c.h.b16 %v394
        %v437 = vunpack.c.l.b16 %v395
        %v438 = vunpack.c.h.b16 %v395
        %v439 = vunpack.c.l.b16 %v396
        %v440 = vunpack.c.h.b16 %v396
        %v441 = vunpack.c.l.b16 %v397
        %v442 = vunpack.c.h.b16 %v397
        %v443 = vunpack.c.l.b16 %v398
        %v444 = vunpack.c.h.b16 %v398
        %v445 = vunpack.c.l.b16 %v399
        %v446 = vunpack.c.h.b16 %v399
        %v447 = vunpack.c.l.b16 %v400
        %v448 = vunpack.c.h.b16 %v400
        %v449 = vunpack.c.l.b16 %v401
        %v450 = vunpack.c.h.b16 %v401
        %v451 = vunpack.c.l.b16 %v402
        %v452 = vunpack.c.h.b16 %v402
        %v453 = vunpack.c.l.b16 %v403
        %v454 = vunpack.c.h.b16 %v403
        %v455 = vunpack.c.l.b16 %v404
        %v456 = vunpack.c.h.b16 %v404
        %v457 = vunpack.c.l.b16 %v405
        %v458 = vunpack.c.h.b16 %v405
        %v459 = vunpack.c.l.b16 %v406
        %v460 = vunpack.c.h.b16 %v406
        %v461 = vpack.c.b16 %v431, %v429
        %v462 = vpack.c.b16 %v432, %v430
        %v463 = vpack.c.b16 %v435, %v433
        %v464 = vpack.c.b16 %v436, %v434
        %v465 = vpack.c.b16 %v439, %v437
        %v466 = vpack.c.b16 %v440, %v438
        %v467 = vpack.c.b16 %v443, %v441
        %v468 = vpack.c.b16 %v444, %v442
        %v469 = vpack.c.b16 %v447, %v445
        %v470 = vpack.c.b16 %v448, %v446
        %v471 = vpack.c.b16 %v451, %v449
        %v472 = vpack.c.b16 %v452, %v450
        %v473 = vpack.c.b16 %v455, %v453
        %v474 = vpack.c.b16 %v456, %v454
        %v475 = vpack.c.b16 %v459, %v457
        %v476 = vpack.c.b16 %v460, %v458
        %493 = vmatpush.bf16.msra.mxu0 %v475
        %494 = vmatpush.bf16.msra.mxu0 %v473
        %495 = vmatpush.bf16.msra.mxu0 %v471
        %496 = vmatpush.bf16.msra.mxu0 %v469
        %497 = vmatpush.bf16.msra.mxu0 %v467
        %498 = vmatpush.bf16.msra.mxu0 %v465
        %499 = vmatpush.bf16.msra.mxu0 %v463
        %500 = vmatpush.bf16.msra.mxu0 %v461
        %501 = vmatmul.bf16.gmra.mxu0 %v390
        %v502 = vpop.f32.mrf.mxu0
        %v503 = vadd.f32 %v409, %v502
        %v504 = vpop.f32.mrf.mxu0
        %505 = vdwg.mxu0
        %506 = vmatpush.bf16.msra.mxu0 %v476
        %507 = vmatpush.bf16.msra.mxu0 %v474
        %508 = vmatpush.bf16.msra.mxu0 %v472
        %509 = vmatpush.bf16.msra.mxu0 %v470
        %510 = vmatpush.bf16.msra.mxu0 %v468
        %511 = vmatpush.bf16.msra.mxu0 %v466
        %512 = vmatpush.bf16.msra.mxu0 %v464
        %513 = vmatpush.bf16.msra.mxu0 %v462
        %514 = vmatmul.bf16.gmra.mxu0 %v390
        %v515 = vpop.f32.mrf.mxu0
        %v516 = vadd.f32 %v410, %v515
        %v517 = vpop.f32.mrf.mxu0
        %518 = vdwg.mxu0
        %v519 = vmul.f32 %v503, 0.0028266632
        %v520 = vmul.f32 %v516, 0.0028266632
        %v521 = vround.ne.pseudo %v519
        %v522 = vround.ne.pseudo %v520
        %v523 = vmax.f32 %v521, -125.0
        %v524 = vmax.f32 %v522, -125.0
        %v525 = vmin.f32 %v523, 130.0
        %v526 = vmin.f32 %v524, 130.0
        %v527 = vmul.f32 %v525, 0.0078125
        %v528 = vmul.f32 %v526, 0.0078125
        %v529 = vmul.f32 %v527, 0.7978846
        %v530 = vmul.f32 %v528, 0.7978846
        %v531 = vmul.f32 %v527, %v527
        %v532 = vmul.f32 %v528, %v528
        %v533 = vmul.f32 %v531, 0.044715
        %v534 = vmul.f32 %v532, 0.044715
        %v535 = vadd.f32 %v533, 1.0
        %v536 = vadd.f32 %v534, 1.0
        %v537 = vmul.f32 %v529, %v535
        %v538 = vmul.f32 %v530, %v536
        %v539 = vtanh.pop %v537
        %v540 = vtanh.pop %v538
        %v541 = vmul.f32 %v539, 0.5
        %v542 = vmul.f32 %v540, 0.5
        %v543 = vadd.f32 %v541, 0.5
        %v544 = vadd.f32 %v542, 0.5
        %v545 = vmul.f32 %v527, %v543
        %v546 = vmul.f32 %v528, %v544
        %v547 = vmul.f32 %v545, 128.0
        %v548 = vmul.f32 %v546, 128.0
        %v549 = vround.ne.pseudo %v547
        %v550 = vround.ne.pseudo %v548
        %v551 = vadd.f32 %v549, 5.0
        %v552 = vadd.f32 %v550, 5.0
        %v553 = vmax.f32 %v551, -128.0
        %v554 = vmax.f32 %v552, -128.0
        %v555 = vmin.f32 %v553, 127.0
        %v556 = vmin.f32 %v554, 127.0
        %v557 = vpack.c.bf16 %v555, %v555
        %v558 = vpack.c.bf16 %v556, %v556
        %v559 = vld [vmem:[%s331] sm:$0xf]
        %v560 = vld [vmem:[%s331 + $0x4] sm:$0xf]
        %v561 = vld [vmem:[%s331 + $0x8] sm:$0xf]
        %v562 = vld [vmem:[%s331 + $0xc] sm:$0xf]
        %v563 = vld [vmem:[%s331 + $0x10] sm:$0xf]
        %v564 = vld [vmem:[%s331 + $0x14] sm:$0xf]
        %v565 = vld [vmem:[%s331 + $0x18] sm:$0xf]
        %v566 = vld [vmem:[%s331 + $0x1c] sm:$0xf]
        %v567 = vld [vmem:[%s331 + $0x20] sm:$0xf]
        %v568 = vld [vmem:[%s331 + $0x24] sm:$0xf]
        %v569 = vld [vmem:[%s331 + $0x28] sm:$0xf]
        %v570 = vld [vmem:[%s331 + $0x2c] sm:$0xf]
        %v571 = vld [vmem:[%s331 + $0x30] sm:$0xf]
        %v572 = vld [vmem:[%s331 + $0x34] sm:$0xf]
        %v573 = vld [vmem:[%s331 + $0x38] sm:$0xf]
        %v574 = vld [vmem:[%s331 + $0x3c] sm:$0xf]
        %v575 = vld [vmem:[%s331 + $0x40] sm:$0xf]
        %v576 = vld [vmem:[%s331 + $0x44] sm:$0xf]
        %v577 = vld [vmem:[%s331 + $0x48] sm:$0xf]
        %v578 = vld [vmem:[%s331 + $0x4c] sm:$0xf]
        %v579 = vld [vmem:[%s331 + $0x50] sm:$0xf]
        %v580 = vld [vmem:[%s331 + $0x54] sm:$0xf]
        %v581 = vld [vmem:[%s331 + $0x58] sm:$0xf]
        %v582 = vld [vmem:[%s331 + $0x5c] sm:$0xf]
        %v583 = vld [vmem:[%s331 + $0x60] sm:$0xf]
        %v584 = vld [vmem:[%s331 + $0x64] sm:$0xf]
        %v585 = vld [vmem:[%s331 + $0x68] sm:$0xf]
        %v586 = vld [vmem:[%s331 + $0x6c] sm:$0xf]
        %v587 = vld [vmem:[%s331 + $0x70] sm:$0xf]
        %v588 = vld [vmem:[%s331 + $0x74] sm:$0xf]
        %v589 = vld [vmem:[%s331 + $0x78] sm:$0xf]
        %v590 = vld [vmem:[%s331 + $0x7c] sm:$0xf]
        %v623 = vunpack.c.l.b16 %v559
        %v624 = vunpack.c.l.b16 %v560
        %v625 = vunpack.c.l.b16 %v561
        %v626 = vunpack.c.l.b16 %v562
        %v627 = vunpack.c.l.b16 %v563
        %v628 = vunpack.c.l.b16 %v564
        %v629 = vunpack.c.l.b16 %v565
        %v630 = vunpack.c.l.b16 %v566
        %v631 = vunpack.c.l.b16 %v567
        %v632 = vunpack.c.l.b16 %v568
        %v633 = vunpack.c.l.b16 %v569
        %v634 = vunpack.c.l.b16 %v570
        %v635 = vunpack.c.l.b16 %v571
        %v636 = vunpack.c.l.b16 %v572
        %v637 = vunpack.c.l.b16 %v573
        %v638 = vunpack.c.l.b16 %v574
        %v639 = vunpack.c.l.b16 %v575
        %v640 = vunpack.c.l.b16 %v576
        %v641 = vunpack.c.l.b16 %v577
        %v642 = vunpack.c.l.b16 %v578
        %v643 = vunpack.c.l.b16 %v579
        %v644 = vunpack.c.l.b16 %v580
        %v645 = vunpack.c.l.b16 %v581
        %v646 = vunpack.c.l.b16 %v582
        %v647 = vunpack.c.l.b16 %v583
        %v648 = vunpack.c.l.b16 %v584
        %v649 = vunpack.c.l.b16 %v585
        %v650 = vunpack.c.l.b16 %v586
        %v651 = vunpack.c.l.b16 %v587
        %v652 = vunpack.c.l.b16 %v588
        %v653 = vunpack.c.l.b16 %v589
        %v654 = vunpack.c.l.b16 %v590
        %v655 = vpack.c.b16 %v624, %v623
        %v656 = vpack.c.b16 %v626, %v625
        %v657 = vpack.c.b16 %v628, %v627
        %v658 = vpack.c.b16 %v630, %v629
        %v659 = vpack.c.b16 %v632, %v631
        %v660 = vpack.c.b16 %v634, %v633
        %v661 = vpack.c.b16 %v636, %v635
        %v662 = vpack.c.b16 %v638, %v637
        %v663 = vpack.c.b16 %v640, %v639
        %v664 = vpack.c.b16 %v642, %v641
        %v665 = vpack.c.b16 %v644, %v643
        %v666 = vpack.c.b16 %v646, %v645
        %v667 = vpack.c.b16 %v648, %v647
        %v668 = vpack.c.b16 %v650, %v649
        %v669 = vpack.c.b16 %v652, %v651
        %v670 = vpack.c.b16 %v654, %v653
        %687 = vmatpush.bf16.msra.mxu0 %v662
        %688 = vmatpush.bf16.msra.mxu0 %v661
        %689 = vmatpush.bf16.msra.mxu0 %v660
        %690 = vmatpush.bf16.msra.mxu0 %v659
        %691 = vmatpush.bf16.msra.mxu0 %v658
        %692 = vmatpush.bf16.msra.mxu0 %v657
        %693 = vmatpush.bf16.msra.mxu0 %v656
        %694 = vmatpush.bf16.msra.mxu0 %v655
        %695 = vmatmul.bf16.gmra.mxu0 %v557
        %v696 = vpop.f32.mrf.mxu0
        %v697 = vadd.f32 0.0, %v696
        %v698 = vpop.f32.mrf.mxu0
        %699 = vdwg.mxu0
        %700 = vmatpush.bf16.msra.mxu0 %v670
        %701 = vmatpush.bf16.msra.mxu0 %v669
        %702 = vmatpush.bf16.msra.mxu0 %v668
        %703 = vmatpush.bf16.msra.mxu0 %v667
        %704 = vmatpush.bf16.msra.mxu0 %v666
        %705 = vmatpush.bf16.msra.mxu0 %v665
        %706 = vmatpush.bf16.msra.mxu0 %v664
        %707 = vmatpush.bf16.msra.mxu0 %v663
        %708 = vmatmul.bf16.gmra.mxu0 %v558
        %v709 = vpop.f32.mrf.mxu0
        %v710 = vadd.f32 %v697, %v709
        %v711 = vpop.f32.mrf.mxu0
        %712 = vdwg.mxu0
        %v713 = vld [vmem:[#allocation3] sm:$0xff]
        %v714 = vadd.f32 %v713, %v710
        %715 = vst [vmem:[#allocation3] sm:$0xff] %v714
        %p716 = scmp.eq.s32.totalorder %s33, 1
        // Predicated region
        $region61: #{tpu_custom_call.1} parent=39 // pred_check
          %p717 = pneg %p716
        $region62: #{tpu_custom_call.1} parent=39 // pred_check_branch
          %719 = sbr.rel (%p717) target = $region64
        $region63: #{tpu_custom_call.1} parent=39 // pred_region
          %v720 = vld [vmem:[#allocation3] sm:$0xff]
          %v721 = vmul.f32 %v720, 5.4084508e-06
          %v722 = vld [vmem:[%s4] sm:$0x1]
          %v724 = vperm.slane %v722, 0
          %v726 = vadd.f32 %v721, %v724
          %727 = vst [vmem:[%s373] sm:$0xff] %v726
        $region64: #{tpu_custom_call.1} parent=39 // pred_fallthru
          _
        %s728 = sand.u32 %s173, 1
        %s729 = scalar_lea.sflag [#allocation6], %s728
        %s730 = sand.u32 %s173, 1
        %s731 = smul.addr %s730, 8
        %s732 = scalar_lea.vmem [#allocation12], %s731
        // Predicated region
        $region65: #{tpu_custom_call.1} parent=39 // pred_check
          %p733 = pneg %p183
        $region66: #{tpu_custom_call.1} parent=39 // pred_check_branch
          %735 = sbr.rel (%p733) target = $region68
        $region67: #{tpu_custom_call.1} parent=39 // pred_region
          %737 = vsyncadd %s729, 0
          %s738 = smul.addr %s32, 8
          %s739 = scalar_lea.hbm %s5, %s738
          %s741 = sshll.u32 %s732, 4
          %s742 = int_to_ptr.vmem [resolvable:$true] %s741
          %s743 = sshll.u32 %s739, 4
          %s744 = int_to_ptr.hbm [resolvable:$true] %s743
          %746 = dma.vmem_to_hbm [thread:$0]  %s742, 128, %s744, %s729
        $region68: #{tpu_custom_call.1} parent=39 // pred_fallthru
          _
      $region40: #{tpu_custom_call.1} parent=5 // pred_fallthru
        _
      %p747 = scmp.le.s32.totalorder 2, %s23
      // Predicated region
      $region69: #{tpu_custom_call.1} parent=5 // pred_check
        %p748 = pneg %p747
      $region70: #{tpu_custom_call.1} parent=5 // pred_check_branch
        %750 = sbr.rel (%p748) target = $region72
      $region71: #{tpu_custom_call.1} parent=5 // pred_region
        %s751 = ssub.s32 %s23, 2
        // Predicated region
        $region73: #{tpu_custom_call.1} parent=71 // pred_check
          %p752 = pneg %p189
        $region74: #{tpu_custom_call.1} parent=71 // pred_check_branch
          %754 = sbr.rel (%p752) target = $region76
        $region75: #{tpu_custom_call.1} parent=71 // pred_region
          %s755 = sand.u32 %s174, 1
          %s756 = scalar_lea.sflag [#allocation6], %s755
          %s757 = sand.u32 %s174, 1
          %s758 = smul.addr %s757, 8
          %s759 = scalar_lea.vmem [#allocation12], %s758
          %761 = dma.done %s756, 128
        $region76: #{tpu_custom_call.1} parent=71 // pred_fallthru
          _
      $region72: #{tpu_custom_call.1} parent=5 // pred_fallthru
        _
    $region6: #{tpu_custom_call.1} parent=1 // loop_footer
      %s27 = sadd.s32 1, %s23
    $region7: #{tpu_custom_call.1} parent=1 // loop_footer_branch
      %22 = sbr.rel target = $region3
    $region8: #{tpu_custom_call.1} parent=1 // loop_exit
      _
    %762 = vsyncpa [#allocation5], 1
    %s763 = scalar_lea.sflag [#allocation5], 1
    %764 = vsyncpa %s763, 1
    %765 = vsyncpa [#allocation8], 1
    %s766 = scalar_lea.sflag [#allocation8], 1
    %767 = vsyncpa %s766, 1
    %768 = vsyncpa [#allocation11], 1
    %s769 = scalar_lea.sflag [#allocation11], 1
    %770 = vsyncpa %s769, 1
    %771 = vsyncpa [#allocation6], 1
    %s772 = scalar_lea.sflag [#allocation6], 1
    %773 = vsyncpa %s772, 1

</llo_original>
